<compile_context>
chip_gen: v7x
topology: tpu7x:2x2x1
jax: 0.10.0
libtpu: 0.0.40
codegen_flags: <defaults>
</compile_context>

<pallas_src>
import functools

import jax
import jax.numpy as jnp
from jax.experimental import pallas as pl
from jax.experimental.pallas import tpu as pltpu


def _round_up(n, m):
    return ((n + m - 1) // m) * m


# --------------------------------------------------------------------------
# Kernel: whole 4-layer MLP fused; weights resident in VMEM, activations never
# round-trip to HBM.
# --------------------------------------------------------------------------
def _mlp_kernel(x_ref,
                w1_ref, b1_ref,
                w2_ref, b2_ref,
                w3_ref, b3_ref,
                w4_ref, b4_ref,
                o_ref):
    compute_dtype = w1_ref.dtype  # bf16 (or f32) MXU operand dtype

    # In-kernel cast of x (f32 in HBM -> compute dtype); hidden under MXU work.
    x = x_ref[...].astype(compute_dtype)

    h = jnp.dot(x, w1_ref[...], preferred_element_type=jnp.float32) + b1_ref[...]
    h = jnp.maximum(h, 0.0).astype(compute_dtype)

    h = jnp.dot(h, w2_ref[...], preferred_element_type=jnp.float32) + b2_ref[...]
    h = jnp.maximum(h, 0.0).astype(compute_dtype)

    h = jnp.dot(h, w3_ref[...], preferred_element_type=jnp.float32) + b3_ref[...]
    h = jnp.maximum(h, 0.0).astype(compute_dtype)

    z = jnp.dot(h, w4_ref[...], preferred_element_type=jnp.float32) + b4_ref[...]
    o_ref[...] = jax.nn.sigmoid(z).astype(o_ref.dtype)


# --------------------------------------------------------------------------
# Host-side helpers
# --------------------------------------------------------------------------
def prepare_params(params, compute_dtype=jnp.bfloat16):
    """One-time (model-load) preparation: cast weights to the MXU operand
    dtype, keep biases f32 as (1, out). No zero padding — whole-array blocks
    are exempt from the (8,128) divisibility rule, so padded bytes would only
    add HBM traffic in the weight-bound regime."""
    out = {}
    for li in range(1, 5):
        w = params[f"w{li}"]
        b = params[f"b{li}"]
        out[f"w{li}"] = jnp.asarray(w, compute_dtype)
        out[f"b{li}"] = jnp.asarray(b, jnp.float32).reshape(1, -1)
    return out


def _vmem_capacity_bytes():
    try:
        return int(pltpu.get_tpu_info().vmem_capacity_bytes)
    except Exception:
        return 64 * 1024 * 1024  # conservative (v7x per-TC) fallback


def _act_bytes(bt, dims, compute_itemsize):
    """Per-step VMEM estimate for activations: double-buffered f32 x/out tiles
    plus f32 accumulators and their compute-dtype copies for hidden layers."""
    in_dim, d1, d2, d3, out_dim = dims
    io = 2 * bt * in_dim * 4 + 2 * bt * out_dim * 4
    act = bt * (d1 + d2 + d3) * (4 + compute_itemsize)
    return io + act


def _pick_batch_tile(B, dims, compute_itemsize, act_budget):
    # Small/medium B: a single grid step is preferred (weight-HBM-bound regime;
    # avoids duplicating the weight DMA across v7x's two TensorCores).
    if B <= 1024 and _act_bytes(B, dims, compute_itemsize) <= act_budget:
        return B
    for t in (1024, 512, 256, 128, 64, 32, 16, 8):
        if t <= B and _act_bytes(t, dims, compute_itemsize) <= act_budget:
            return t
    return 8


def neuralnetwork2_forward(x, prepared, *, batch_tile=None):
    """Forward pass of Neuralnetwork2 as a single fused Pallas kernel.

    x:        (B, in_dim) float32
    prepared: dict from prepare_params() — w1..w4 shaped (in, out) in the
              compute dtype, b1..b4 shaped (1, out) float32.
    Returns (B, out_dim) float32.
    """
    w1, b1 = prepared["w1"], prepared["b1"]
    w2, b2 = prepared["w2"], prepared["b2"]
    w3, b3 = prepared["w3"], prepared["b3"]
    w4, b4 = prepared["w4"], prepared["b4"]

    B, in_dim = x.shape
    d1, d2, d3 = w1.shape[1], w2.shape[1], w3.shape[1]
    out_dim = w4.shape[1]
    dims = (in_dim, d1, d2, d3, out_dim)
    compute_itemsize = jnp.dtype(w1.dtype).itemsize

    # --- generation-aware VMEM budget --------------------------------------
    cap = _vmem_capacity_bytes()                     # 64 MiB (v7x) / 128 MiB (v5e/v6e)
    param_bytes = sum(int(p.size) * p.dtype.itemsize
                      for p in (w1, b1, w2, b2, w3, b3, w4, b4))
    act_budget = max(8 * 1024 * 1024, int(0.75 * cap) - param_bytes)
    # TODO(synk): if param_bytes alone exceeds ~half the per-core VMEM budget
    # (possible on v7x's 64 MiB for very large n_hidden), split the kernel per
    # layer or N-tile the widest weight instead of keeping all weights resident.

    # --- batch tiling -------------------------------------------------------
    if batch_tile is None:
        batch_tile = _pick_batch_tile(B, dims, compute_itemsize, act_budget)
    batch_tile = min(batch_tile, B)

    # Pad B up to a tile multiple (a few zero rows are essentially free) so we
    # never fall back to one giant un-pipelined block.
    if batch_tile < B and B % batch_tile != 0:
        b_pad = _round_up(B, batch_tile)
        x_in = jnp.pad(x, ((0, b_pad - B), (0, 0)))
    else:
        b_pad = B if batch_tile == B else B
        x_in = x
    if batch_tile == B:
        b_pad = B
    num_steps = b_pad // batch_tile

    # Only shard the batch axis across TensorCores when compute-bound; in the
    # weight-DMA-bound regime "parallel" would duplicate the weight traffic.
    compute_bound = num_steps >= 2 and b_pad >= 1024
    semantics = ("parallel",) if compute_bound else ("arbitrary",)

    # --- VMEM limit ---------------------------------------------------------
    vmem_need = param_bytes + _act_bytes(batch_tile, dims, compute_itemsize)
    vmem_limit = int(min(cap - 8 * 1024 * 1024,
                         max(32 * 1024 * 1024, int(1.5 * vmem_need))))

    # --- cost estimate (real, unpadded dims) --------------------------------
    flops = 2 * B * (in_dim * d1 + d1 * d2 + d2 * d3 + d3 * out_dim)
    transcendentals = B * out_dim  # sigmoid
    bytes_accessed = x.size * 4 + param_bytes + B * out_dim * 4
    cost = pl.CostEstimate(flops=flops, transcendentals=transcendentals,
                           bytes_accessed=bytes_accessed)

    # --- BlockSpecs ----------------------------------------------------------
    def const_spec(shape):
        # Whole-array block, constant across the batch grid axis; single
        # buffered since the block never changes (halves VMEM residency).
        return pl.BlockSpec(shape, lambda i: (0, 0),
                            pipeline_mode=pl.Buffered(buffer_count=1))

    out = pl.pallas_call(
        _mlp_kernel,
        out_shape=jax.ShapeDtypeStruct((b_pad, out_dim), jnp.float32),
        grid_spec=pltpu.PrefetchScalarGridSpec(
            num_scalar_prefetch=0,
            grid=(num_steps,),
            in_specs=[
                pl.BlockSpec((batch_tile, in_dim), lambda i: (i, 0)),
                const_spec(w1.shape), const_spec(b1.shape),
                const_spec(w2.shape), const_spec(b2.shape),
                const_spec(w3.shape), const_spec(b3.shape),
                const_spec(w4.shape), const_spec(b4.shape),
            ],
            out_specs=pl.BlockSpec((batch_tile, out_dim), lambda i: (i, 0)),
        ),
        compiler_params=pltpu.CompilerParams(
            dimension_semantics=semantics,
            vmem_limit_bytes=vmem_limit),
        cost_estimate=cost,
    )(x_in, w1, b1, w2, b2, w3, b3, w4, b4)

    if b_pad != B:
        out = out[:B]
    return out


# --------------------------------------------------------------------------
# Synthetic parameters (the original module loads weight_matrix / bias_vector
# from file; here we build deterministic params with matching shapes).
# --------------------------------------------------------------------------
def init_params(key, in_dim, n_hidden, out_dim):
    dims = [in_dim, 4 * n_hidden, 2 * n_hidden, n_hidden, out_dim]
    params = {}
    for li in range(4):
        d_in, d_out = dims[li], dims[li + 1]
        key, kw, kb = jax.random.split(key, 3)
        scale = 1.0 / jnp.sqrt(jnp.float32(d_in))
        # Stored already transposed: (in, out). PyTorch stores (out, in).
        params[f"w{li + 1}"] = jax.random.uniform(
            kw, (d_in, d_out), jnp.float32, -scale, scale)
        params[f"b{li + 1}"] = jax.random.uniform(
            kb, (1, d_out), jnp.float32, -scale, scale)
    return params


def reference_forward(x, params, compute_dtype=jnp.float32):
    def lin(h, w, b):
        return jnp.dot(h.astype(compute_dtype), w.astype(compute_dtype),
                       preferred_element_type=jnp.float32) + b
    h = jnp.maximum(lin(x, params["w1"], params["b1"]), 0.0)
    h = jnp.maximum(lin(h, params["w2"], params["b2"]), 0.0)
    h = jnp.maximum(lin(h, params["w3"], params["b3"]), 0.0)
    return jax.nn.sigmoid(lin(h, params["w4"], params["b4"]))


if __name__ == "__main__":
    key = jax.random.PRNGKey(0)
    batch, in_dim, n_hidden, out_dim = 8, 16, 32, 8

    key, kx = jax.random.split(key)
    x = jax.random.normal(kx, (batch, in_dim), jnp.float32)
    params = init_params(key, in_dim, n_hidden, out_dim)

    # Hoisted out of the per-call path: prepare (cast) weights once.
    prepared = prepare_params(params, compute_dtype=jnp.bfloat16)

    fwd = jax.jit(functools.partial(neuralnetwork2_forward, prepared=prepared))
    y = jax.block_until_ready(fwd(x))
    assert y.shape == (batch, out_dim)

    # Exact-semantics check vs. a bf16-matmul reference (same numerics)...
    y_ref_bf16 = reference_forward(x, params, compute_dtype=jnp.bfloat16)
    assert jnp.allclose(y, y_ref_bf16, atol=1e-3, rtol=1e-3)
    # ...and a sanity check vs. the full-f32 PyTorch-equivalent forward.
    y_ref_f32 = reference_forward(x, params, compute_dtype=jnp.float32)
    assert jnp.allclose(y, y_ref_f32, atol=3e-2, rtol=3e-2)

    print("KERNEL_OK")
</pallas_src>

<mosaic_0001>
module attributes {stable_mosaic.version = 11 : i64} {
  func.func @_mlp_kernel(%arg0: i32, %arg1: memref<8x16xf32, #tpu.memory_space<vmem>>, %arg2: memref<16x128xbf16, #tpu.memory_space<vmem>>, %arg3: memref<1x128xf32, #tpu.memory_space<vmem>>, %arg4: memref<128x64xbf16, #tpu.memory_space<vmem>>, %arg5: memref<1x64xf32, #tpu.memory_space<vmem>>, %arg6: memref<64x32xbf16, #tpu.memory_space<vmem>>, %arg7: memref<1x32xf32, #tpu.memory_space<vmem>>, %arg8: memref<32x8xbf16, #tpu.memory_space<vmem>>, %arg9: memref<1x8xf32, #tpu.memory_space<vmem>>, %arg10: memref<8x8xf32, #tpu.memory_space<vmem>>) attributes {dimension_semantics = [#tpu.dimension_semantics<arbitrary>], iteration_bounds = array<i64: 1>, scalar_prefetch = 0 : i64, scratch_operands = 0 : i64, tpu.core_type = #tpu.core_type<tc>, window_params = [{transform_indices = @transform_0, window_bounds = array<i64: 8, 16>}, {pipeline_mode = #tpu.pipeline_mode<synchronous>, transform_indices = @transform_1, window_bounds = array<i64: 16, 128>}, {pipeline_mode = #tpu.pipeline_mode<synchronous>, transform_indices = @transform_2, window_bounds = array<i64: 1, 128>}, {pipeline_mode = #tpu.pipeline_mode<synchronous>, transform_indices = @transform_3, window_bounds = array<i64: 128, 64>}, {pipeline_mode = #tpu.pipeline_mode<synchronous>, transform_indices = @transform_4, window_bounds = array<i64: 1, 64>}, {pipeline_mode = #tpu.pipeline_mode<synchronous>, transform_indices = @transform_5, window_bounds = array<i64: 64, 32>}, {pipeline_mode = #tpu.pipeline_mode<synchronous>, transform_indices = @transform_6, window_bounds = array<i64: 1, 32>}, {pipeline_mode = #tpu.pipeline_mode<synchronous>, transform_indices = @transform_7, window_bounds = array<i64: 32, 8>}, {pipeline_mode = #tpu.pipeline_mode<synchronous>, transform_indices = @transform_8, window_bounds = array<i64: 1, 8>}, {transform_indices = @transform_9, window_bounds = array<i64: 8, 8>}]} {
    %c0 = arith.constant 0 : index
    %c0_0 = arith.constant 0 : index
    %0 = vector.load %arg1[%c0, %c0_0] : memref<8x16xf32, #tpu.memory_space<vmem>>, vector<8x16xf32>
    %1 = arith.truncf %0 : vector<8x16xf32> to vector<8x16xbf16>
    %c0_1 = arith.constant 0 : index
    %c0_2 = arith.constant 0 : index
    %2 = vector.load %arg2[%c0_1, %c0_2] : memref<16x128xbf16, #tpu.memory_space<vmem>>, vector<16x128xbf16>
    %cst = arith.constant dense<0.000000e+00> : vector<8x128xf32>
    %3 = tpu.matmul %1, %2, %cst {dimension_numbers = #tpu.dot_dimension_numbers<[1], [0], [0], [1], [0, 0, 1, 1], [], []>} : vector<8x16xbf16>, vector<16x128xbf16>, vector<8x128xf32> -> vector<8x128xf32>
    %c0_3 = arith.constant 0 : index
    %c0_4 = arith.constant 0 : index
    %4 = vector.load %arg3[%c0_3, %c0_4] : memref<1x128xf32, #tpu.memory_space<vmem>>, vector<1x128xf32>
    %5 = vector.broadcast %4 : vector<1x128xf32> to vector<8x128xf32>
    %6 = arith.addf %3, %5 : vector<8x128xf32>
    %cst_5 = arith.constant 0.000000e+00 : f32
    %7 = vector.broadcast %cst_5 : f32 to vector<8x128xf32>
    %8 = arith.maximumf %6, %7 : vector<8x128xf32>
    %9 = arith.truncf %8 : vector<8x128xf32> to vector<8x128xbf16>
    %c0_6 = arith.constant 0 : index
    %c0_7 = arith.constant 0 : index
    %10 = vector.load %arg4[%c0_6, %c0_7] : memref<128x64xbf16, #tpu.memory_space<vmem>>, vector<128x64xbf16>
    %cst_8 = arith.constant dense<0.000000e+00> : vector<8x64xf32>
    %11 = tpu.matmul %9, %10, %cst_8 {dimension_numbers = #tpu.dot_dimension_numbers<[1], [0], [0], [1], [0, 0, 1, 1], [], []>} : vector<8x128xbf16>, vector<128x64xbf16>, vector<8x64xf32> -> vector<8x64xf32>
    %c0_9 = arith.constant 0 : index
    %c0_10 = arith.constant 0 : index
    %12 = vector.load %arg5[%c0_9, %c0_10] : memref<1x64xf32, #tpu.memory_space<vmem>>, vector<1x64xf32>
    %13 = vector.broadcast %12 : vector<1x64xf32> to vector<8x64xf32>
    %14 = arith.addf %11, %13 : vector<8x64xf32>
    %cst_11 = arith.constant 0.000000e+00 : f32
    %15 = vector.broadcast %cst_11 : f32 to vector<8x64xf32>
    %16 = arith.maximumf %14, %15 : vector<8x64xf32>
    %17 = arith.truncf %16 : vector<8x64xf32> to vector<8x64xbf16>
    %c0_12 = arith.constant 0 : index
    %c0_13 = arith.constant 0 : index
    %18 = vector.load %arg6[%c0_12, %c0_13] : memref<64x32xbf16, #tpu.memory_space<vmem>>, vector<64x32xbf16>
    %cst_14 = arith.constant dense<0.000000e+00> : vector<8x32xf32>
    %19 = tpu.matmul %17, %18, %cst_14 {dimension_numbers = #tpu.dot_dimension_numbers<[1], [0], [0], [1], [0, 0, 1, 1], [], []>} : vector<8x64xbf16>, vector<64x32xbf16>, vector<8x32xf32> -> vector<8x32xf32>
    %c0_15 = arith.constant 0 : index
    %c0_16 = arith.constant 0 : index
    %20 = vector.load %arg7[%c0_15, %c0_16] : memref<1x32xf32, #tpu.memory_space<vmem>>, vector<1x32xf32>
    %21 = vector.broadcast %20 : vector<1x32xf32> to vector<8x32xf32>
    %22 = arith.addf %19, %21 : vector<8x32xf32>
    %cst_17 = arith.constant 0.000000e+00 : f32
    %23 = vector.broadcast %cst_17 : f32 to vector<8x32xf32>
    %24 = arith.maximumf %22, %23 : vector<8x32xf32>
    %25 = arith.truncf %24 : vector<8x32xf32> to vector<8x32xbf16>
    %c0_18 = arith.constant 0 : index
    %c0_19 = arith.constant 0 : index
    %26 = vector.load %arg8[%c0_18, %c0_19] : memref<32x8xbf16, #tpu.memory_space<vmem>>, vector<32x8xbf16>
    %cst_20 = arith.constant dense<0.000000e+00> : vector<8x8xf32>
    %27 = tpu.matmul %25, %26, %cst_20 {dimension_numbers = #tpu.dot_dimension_numbers<[1], [0], [0], [1], [0, 0, 1, 1], [], []>} : vector<8x32xbf16>, vector<32x8xbf16>, vector<8x8xf32> -> vector<8x8xf32>
    %c0_21 = arith.constant 0 : index
    %c0_22 = arith.constant 0 : index
    %28 = vector.load %arg9[%c0_21, %c0_22] : memref<1x8xf32, #tpu.memory_space<vmem>>, vector<1x8xf32>
    %29 = vector.broadcast %28 : vector<1x8xf32> to vector<8x8xf32>
    %30 = arith.addf %27, %29 : vector<8x8xf32>
    %31 = arith.negf %30 : vector<8x8xf32>
    %32 = math.exp %31 : vector<8x8xf32>
    %cst_23 = arith.constant 1.000000e+00 : f32
    %33 = vector.broadcast %cst_23 : f32 to vector<8x8xf32>
    %34 = arith.addf %33, %32 : vector<8x8xf32>
    %35 = arith.divf %33, %34 : vector<8x8xf32>
    %c0_24 = arith.constant 0 : index
    %c0_25 = arith.constant 0 : index
    %36 = vector.load %arg10[%c0_24, %c0_25] : memref<8x8xf32, #tpu.memory_space<vmem>>, vector<8x8xf32>
    tpu.vector_store %arg10[%c0_24, %c0_25], %35 {strides = array<i32>} : memref<8x8xf32, #tpu.memory_space<vmem>>, vector<8x8xf32>,
    return
  }
  func.func @transform_0(%arg0: i32) -> (i32, i32) {
    %c0_i32 = arith.constant 0 : i32
    %c0_i32_0 = arith.constant 0 : i32
    return %arg0, %c0_i32 : i32, i32
  }
  func.func @transform_1(%arg0: i32) -> (i32, i32) {
    %c0_i32 = arith.constant 0 : i32
    %c0_i32_0 = arith.constant 0 : i32
    %c0_i32_1 = arith.constant 0 : i32
    return %c0_i32, %c0_i32_0 : i32, i32
  }
  func.func @transform_2(%arg0: i32) -> (i32, i32) {
    %c0_i32 = arith.constant 0 : i32
    %c0_i32_0 = arith.constant 0 : i32
    %c0_i32_1 = arith.constant 0 : i32
    return %c0_i32, %c0_i32_0 : i32, i32
  }
  func.func @transform_3(%arg0: i32) -> (i32, i32) {
    %c0_i32 = arith.constant 0 : i32
    %c0_i32_0 = arith.constant 0 : i32
    %c0_i32_1 = arith.constant 0 : i32
    return %c0_i32, %c0_i32_0 : i32, i32
  }
  func.func @transform_4(%arg0: i32) -> (i32, i32) {
    %c0_i32 = arith.constant 0 : i32
    %c0_i32_0 = arith.constant 0 : i32
    %c0_i32_1 = arith.constant 0 : i32
    return %c0_i32, %c0_i32_0 : i32, i32
  }
  func.func @transform_5(%arg0: i32) -> (i32, i32) {
    %c0_i32 = arith.constant 0 : i32
    %c0_i32_0 = arith.constant 0 : i32
    %c0_i32_1 = arith.constant 0 : i32
    return %c0_i32, %c0_i32_0 : i32, i32
  }
  func.func @transform_6(%arg0: i32) -> (i32, i32) {
    %c0_i32 = arith.constant 0 : i32
    %c0_i32_0 = arith.constant 0 : i32
    %c0_i32_1 = arith.constant 0 : i32
    return %c0_i32, %c0_i32_0 : i32, i32
  }
  func.func @transform_7(%arg0: i32) -> (i32, i32) {
    %c0_i32 = arith.constant 0 : i32
    %c0_i32_0 = arith.constant 0 : i32
    %c0_i32_1 = arith.constant 0 : i32
    return %c0_i32, %c0_i32_0 : i32, i32
  }
  func.func @transform_8(%arg0: i32) -> (i32, i32) {
    %c0_i32 = arith.constant 0 : i32
    %c0_i32_0 = arith.constant 0 : i32
    %c0_i32_1 = arith.constant 0 : i32
    return %c0_i32, %c0_i32_0 : i32, i32
  }
  func.func @transform_9(%arg0: i32) -> (i32, i32) {
    %c0_i32 = arith.constant 0 : i32
    %c0_i32_0 = arith.constant 0 : i32
    return %arg0, %c0_i32 : i32, i32
  }
}

</mosaic_0001>

<llo_original>
// kernel: neuralnetwork2_forward.1
$region0: #{neuralnetwork2_forward.1}
  #allocation0 [shape = 'u32[]', space=smem, size = 0x4, offset = 0x4, fixed_abs, tag = 'smem constant byte address 0x4 - core index']
  #allocation1 [shape = 'u32[144,128]{1,0:T(1,128)}', space=vmem, size = 0x12000, scoped, tag = 'internal scratch']
  %s0 = inlined_call_operand.vmem [shape: f32[8,16], index: 0, kind: input, shape index: {}]
  %s1 = inlined_call_operand.hbm [shape: bf16[16,128], index: 1, kind: input, shape index: {}]
  %s2 = inlined_call_operand.hbm [shape: f32[1,128], index: 2, kind: input, shape index: {}]
  %s3 = inlined_call_operand.hbm [shape: bf16[128,64], index: 3, kind: input, shape index: {}]
  %s4 = inlined_call_operand.hbm [shape: f32[1,64], index: 4, kind: input, shape index: {}]
  %s5 = inlined_call_operand.vmem [shape: bf16[64,32], index: 5, kind: input, shape index: {}]
  %s6 = inlined_call_operand.hbm [shape: f32[1,32], index: 6, kind: input, shape index: {}]
  %s7 = inlined_call_operand.hbm [shape: bf16[32,8], index: 7, kind: input, shape index: {}]
  %s8 = inlined_call_operand.vmem [shape: f32[1,8], index: 8, kind: input, shape index: {}]
  %s9 = inlined_call_operand.hbm [shape: f32[8,8], index: 9, kind: output, shape index: {}]
  %s10 = sld [smem:[#allocation0]]
  $region70: #{neuralnetwork2_forward.1} parent=0
    _
  %s12 = ssub.s32 1, %s10
  %s13 = scalar_select 0, %s12, %s10
  $region1: #{neuralnetwork2_forward.1} parent=0
    #allocation2 [shape = 'u8[4096]{0}', space=vmem, size = 0x1000, scoped, tag = 'input window, operand 1, single buffered']
    #allocation3 [shape = 's32[1]{0}', space=sflag, size = 0x4, scoped, tag = 'scoped memory for neuralnetwork2_forward.1']
    #allocation4 [shape = 's32[1]{0}', space=sflag, size = 0x4, scoped, tag = 'scoped memory for neuralnetwork2_forward.1']
    #allocation5 [shape = 'u8[512]{0}', space=vmem, size = 0x400, scoped, tag = 'input window, operand 2, single buffered']
    #allocation6 [shape = 's32[1]{0}', space=sflag, size = 0x4, scoped, tag = 'scoped memory for neuralnetwork2_forward.1']
    #allocation7 [shape = 'u8[32768]{0}', space=vmem, size = 0x8000, scoped, tag = 'input window, operand 3, single buffered']
    #allocation8 [shape = 'u8[512]{0}', space=vmem, size = 0x400, scoped, tag = 'input window, operand 4, single buffered']
    #allocation9 [shape = 's32[1]{0}', space=sflag, size = 0x4, scoped, tag = 'scoped memory for neuralnetwork2_forward.1']
    #allocation10 [shape = 'u8[512]{0}', space=vmem, size = 0x400, scoped, tag = 'input window, operand 6, single buffered']
    #allocation11 [shape = 'u8[8192]{0}', space=vmem, size = 0x2000, scoped, tag = 'input window, operand 7, single buffered']
    #allocation12 [shape = 's32[1]{0}', space=sflag, size = 0x4, scoped, tag = 'scoped memory for neuralnetwork2_forward.1']
    #allocation13 [shape = 'u8[4096]{0}', space=vmem, size = 0x1000, scoped, tag = 'output window, operand 0, single buffered']
    %14 = vsyncpa [#allocation3], 0
    %15 = vsyncpa [#allocation6], 0
    %16 = vsyncpa [#allocation9], 0
    %17 = vsyncpa [#allocation12], 0
    %18 = vsyncpa [#allocation4], 0
    // Predicated region
    $region2: #{neuralnetwork2_forward.1} parent=1 // pred_check
      _
    $region3: #{neuralnetwork2_forward.1} parent=1 // pred_check_branch
      %20 = sbr.rel (0) target = $region5
    $region4: #{neuralnetwork2_forward.1} parent=1 // pred_region
      _
    $region5: #{neuralnetwork2_forward.1} parent=1 // pred_fallthru
      _
    // Predicated region
    $region6: #{neuralnetwork2_forward.1} parent=1 // pred_check
      _
    $region7: #{neuralnetwork2_forward.1} parent=1 // pred_check_branch
      %22 = sbr.rel (0) target = $region9
    $region8: #{neuralnetwork2_forward.1} parent=1 // pred_region
      %s24 = ssub.s32 128, 128
      %25 = vsyncadd [#allocation3], %s24
      %s26 = sshll.u32 [#allocation2], 4
      %s27 = int_to_ptr.vmem [resolvable:$true] %s26
      %32 = dma.hbm_to_vmem [thread:$0]  %s1, 128, %s27, [#allocation3], 64, 64, 4
    $region9: #{neuralnetwork2_forward.1} parent=1 // pred_fallthru
      _
    // Predicated region
    $region10: #{neuralnetwork2_forward.1} parent=1 // pred_check
      _
    $region11: #{neuralnetwork2_forward.1} parent=1 // pred_check_branch
      %34 = sbr.rel (0) target = $region13
    $region12: #{neuralnetwork2_forward.1} parent=1 // pred_region
      %s36 = ssub.s32 16, 16
      %37 = vsyncadd [#allocation6], %s36
      %s39 = sshll.u32 [#allocation5], 4
      %s40 = int_to_ptr.vmem [resolvable:$true] %s39
      %42 = dma.hbm_to_vmem [thread:$0]  %s2, 16, %s40, [#allocation6]
    $region13: #{neuralnetwork2_forward.1} parent=1 // pred_fallthru
      _
    // Predicated region
    $region14: #{neuralnetwork2_forward.1} parent=1 // pred_check
      _
    $region15: #{neuralnetwork2_forward.1} parent=1 // pred_check_branch
      %44 = sbr.rel (0) target = $region17
    $region16: #{neuralnetwork2_forward.1} parent=1 // pred_region
      %s46 = ssub.s32 1024, 1024
      %47 = vsyncadd [#allocation6], %s46
      %s48 = sshll.u32 [#allocation7], 4
      %s49 = int_to_ptr.vmem [resolvable:$true] %s48
      %54 = dma.hbm_to_vmem [thread:$0]  %s3, 1024, %s49, [#allocation6], 64, 64, 4
    $region17: #{neuralnetwork2_forward.1} parent=1 // pred_fallthru
      _
    // Predicated region
    $region18: #{neuralnetwork2_forward.1} parent=1 // pred_check
      _
    $region19: #{neuralnetwork2_forward.1} parent=1 // pred_check_branch
      %56 = sbr.rel (0) target = $region21
    $region20: #{neuralnetwork2_forward.1} parent=1 // pred_region
      %s58 = ssub.s32 16, 16
      %59 = vsyncadd [#allocation9], %s58
      %s61 = sshll.u32 [#allocation8], 4
      %s62 = int_to_ptr.vmem [resolvable:$true] %s61
      %64 = dma.hbm_to_vmem [thread:$0]  %s4, 16, %s62, [#allocation9]
    $region21: #{neuralnetwork2_forward.1} parent=1 // pred_fallthru
      _
    // Predicated region
    $region22: #{neuralnetwork2_forward.1} parent=1 // pred_check
      _
    $region23: #{neuralnetwork2_forward.1} parent=1 // pred_check_branch
      %66 = sbr.rel (0) target = $region25
    $region24: #{neuralnetwork2_forward.1} parent=1 // pred_region
      _
    $region25: #{neuralnetwork2_forward.1} parent=1 // pred_fallthru
      _
    // Predicated region
    $region26: #{neuralnetwork2_forward.1} parent=1 // pred_check
      _
    $region27: #{neuralnetwork2_forward.1} parent=1 // pred_check_branch
      %68 = sbr.rel (0) target = $region29
    $region28: #{neuralnetwork2_forward.1} parent=1 // pred_region
      %s70 = ssub.s32 16, 16
      %71 = vsyncadd [#allocation9], %s70
      %s73 = sshll.u32 [#allocation10], 4
      %s74 = int_to_ptr.vmem [resolvable:$true] %s73
      %76 = dma.hbm_to_vmem [thread:$0]  %s6, 16, %s74, [#allocation9]
    $region29: #{neuralnetwork2_forward.1} parent=1 // pred_fallthru
      _
    // Predicated region
    $region30: #{neuralnetwork2_forward.1} parent=1 // pred_check
      _
    $region31: #{neuralnetwork2_forward.1} parent=1 // pred_check_branch
      %78 = sbr.rel (0) target = $region33
    $region32: #{neuralnetwork2_forward.1} parent=1 // pred_region
      %s80 = ssub.s32 256, 256
      %81 = vsyncadd [#allocation12], %s80
      %s82 = sshll.u32 [#allocation11], 4
      %s83 = int_to_ptr.vmem [resolvable:$true] %s82
      %88 = dma.hbm_to_vmem [thread:$0]  %s7, 256, %s83, [#allocation12], 64, 64, 4
    $region33: #{neuralnetwork2_forward.1} parent=1 // pred_fallthru
      _
    // Predicated region
    $region34: #{neuralnetwork2_forward.1} parent=1 // pred_check
      _
    $region35: #{neuralnetwork2_forward.1} parent=1 // pred_check_branch
      %90 = sbr.rel (0) target = $region37
    $region36: #{neuralnetwork2_forward.1} parent=1 // pred_region
      _
    $region37: #{neuralnetwork2_forward.1} parent=1 // pred_fallthru
      _
    // Predicated region
    $region38: #{neuralnetwork2_forward.1} parent=1 // pred_check
      _
    $region39: #{neuralnetwork2_forward.1} parent=1 // pred_check_branch
      %92 = sbr.rel (0) target = $region41
    $region40: #{neuralnetwork2_forward.1} parent=1 // pred_region
      %93 = dma.done [#allocation3], 128
    $region41: #{neuralnetwork2_forward.1} parent=1 // pred_fallthru
      _
    // Predicated region
    $region42: #{neuralnetwork2_forward.1} parent=1 // pred_check
      _
    $region43: #{neuralnetwork2_forward.1} parent=1 // pred_check_branch
      %95 = sbr.rel (0) target = $region45
    $region44: #{neuralnetwork2_forward.1} parent=1 // pred_region
      %96 = dma.done [#allocation6], 16
    $region45: #{neuralnetwork2_forward.1} parent=1 // pred_fallthru
      _
    // Predicated region
    $region46: #{neuralnetwork2_forward.1} parent=1 // pred_check
      _
    $region47: #{neuralnetwork2_forward.1} parent=1 // pred_check_branch
      %98 = sbr.rel (0) target = $region49
    $region48: #{neuralnetwork2_forward.1} parent=1 // pred_region
      %99 = dma.done [#allocation6], 1024
    $region49: #{neuralnetwork2_forward.1} parent=1 // pred_fallthru
      _
    // Predicated region
    $region50: #{neuralnetwork2_forward.1} parent=1 // pred_check
      _
    $region51: #{neuralnetwork2_forward.1} parent=1 // pred_check_branch
      %101 = sbr.rel (0) target = $region53
    $region52: #{neuralnetwork2_forward.1} parent=1 // pred_region
      %102 = dma.done [#allocation9], 16
    $region53: #{neuralnetwork2_forward.1} parent=1 // pred_fallthru
      _
    // Predicated region
    $region54: #{neuralnetwork2_forward.1} parent=1 // pred_check
      _
    $region55: #{neuralnetwork2_forward.1} parent=1 // pred_check_branch
      %104 = sbr.rel (0) target = $region57
    $region56: #{neuralnetwork2_forward.1} parent=1 // pred_region
      %105 = dma.done [#allocation9], 16
    $region57: #{neuralnetwork2_forward.1} parent=1 // pred_fallthru
      _
    // Predicated region
    $region58: #{neuralnetwork2_forward.1} parent=1 // pred_check
      _
    $region59: #{neuralnetwork2_forward.1} parent=1 // pred_check_branch
      %107 = sbr.rel (0) target = $region61
    $region60: #{neuralnetwork2_forward.1} parent=1 // pred_region
      %108 = dma.done [#allocation12], 256
    $region61: #{neuralnetwork2_forward.1} parent=1 // pred_fallthru
      _
    %v110 = vld [vmem:[%s0] sm:$0xff]
    %v111 = vpack.c.bf16 %v110, %v110
    %v112 = vld [vmem:[#allocation2] sm:$0xf]
    %v113 = vld [vmem:[#allocation2 + $0x4] sm:$0xf]
    %v114 = vld [vmem:[#allocation5] sm:$0x1]
    %v116 = vlaneseq
    %v117 = vshrl.u32 %v116, 7
    %v118 = vsub.s32 0, %v117
    %v119 = vrot.slane %v114, %v118
    %v123 = vunpack.c.l.b16 %v112
    %v124 = vunpack.c.l.b16 %v113
    %v125 = vpack.c.b16 %v124, %v123
    %vm127 = vcmask 130048
    %v129 = vsel %vm127, %v111, 0
    %131 = vmatprep.subr.bf16.mxu0 0
    %132 = vmatpush1.bf16.msra.mxu0 %v125
    %133 = vmatprep.subr.bf16.mxu0 0
    %134 = vmatpush1.bf16.msra.mxu0 0
    %135 = vmatprep.subr.bf16.mxu0 0
    %136 = vmatpush1.bf16.msra.mxu0 0
    %137 = vmatprep.subr.bf16.mxu0 0
    %138 = vmatpush1.bf16.msra.mxu0 0
    %139 = vmatprep.subr.bf16.mxu0 0
    %140 = vmatpush1.bf16.msra.mxu0 0
    %141 = vmatprep.subr.bf16.mxu0 0
    %142 = vmatpush1.bf16.msra.mxu0 0
    %143 = vmatprep.subr.bf16.mxu0 0
    %144 = vmatpush1.bf16.msra.mxu0 0
    %145 = vmatprep.subr.bf16.mxu0 0
    %146 = vmatpush1.bf16.msra.mxu0 0
    %147 = vmatprep.subr.bf16.mxu0 0
    %148 = vmatpush1.bf16.msra.mxu0 0
    %149 = vmatprep.subr.bf16.mxu0 0
    %150 = vmatpush1.bf16.msra.mxu0 0
    %151 = vmatprep.subr.bf16.mxu0 0
    %152 = vmatpush1.bf16.msra.mxu0 0
    %153 = vmatprep.subr.bf16.mxu0 0
    %154 = vmatpush1.bf16.msra.mxu0 0
    %155 = vmatprep.subr.bf16.mxu0 0
    %156 = vmatpush1.bf16.msra.mxu0 0
    %157 = vmatprep.subr.bf16.mxu0 0
    %158 = vmatpush1.bf16.msra.mxu0 0
    %159 = vmatprep.subr.bf16.mxu0 0
    %160 = vmatpush1.bf16.msra.mxu0 0
    %161 = vmatprep.subr.bf16.mxu0 0
    %162 = vmatpush1.bf16.msra.mxu0 0
    %163 = vmatprep.mubr.bf16.mxu0 0
    %164 = vmatmul.mubr.bf16.gmra.mrb[0].mxu0 %v129
    %v165 = vpop.f32.mrb[0].mxu0
    %v166 = vadd.f32 %v119, %v165
    %v167 = vpop.f32.mrb[0].mxu0
    %v168 = vpop.f32.mrb[0].mxu0
    %v169 = vpop.f32.mrb[0].mxu0
    %170 = vdwg.mxu0
    %v171 = vmax.f32 %v166, 0.0
    %v172 = vpack.c.bf16 %v171, %v171
    %v173 = vld [vmem:[#allocation7] sm:$0xf]
    %v174 = vld [vmem:[#allocation7 + $0x4] sm:$0xf]
    %v175 = vld [vmem:[#allocation7 + $0x8] sm:$0xf]
    %v176 = vld [vmem:[#allocation7 + $0xc] sm:$0xf]
    %v177 = vld [vmem:[#allocation7 + $0x10] sm:$0xf]
    %v178 = vld [vmem:[#allocation7 + $0x14] sm:$0xf]
    %v179 = vld [vmem:[#allocation7 + $0x18] sm:$0xf]
    %v180 = vld [vmem:[#allocation7 + $0x1c] sm:$0xf]
    %v181 = vld [vmem:[#allocation7 + $0x20] sm:$0xf]
    %v182 = vld [vmem:[#allocation7 + $0x24] sm:$0xf]
    %v183 = vld [vmem:[#allocation7 + $0x28] sm:$0xf]
    %v184 = vld [vmem:[#allocation7 + $0x2c] sm:$0xf]
    %v185 = vld [vmem:[#allocation7 + $0x30] sm:$0xf]
    %v186 = vld [vmem:[#allocation7 + $0x34] sm:$0xf]
    %v187 = vld [vmem:[#allocation7 + $0x38] sm:$0xf]
    %v188 = vld [vmem:[#allocation7 + $0x3c] sm:$0xf]
    %v189 = vld [vmem:[#allocation8] sm:$0x1]
    %v191 = vlaneseq
    %v192 = vshrl.u32 %v191, 7
    %v193 = vsub.s32 0, %v192
    %v194 = vrot.slane %v189, %v193
    %v212 = vunpack.c.l.b16 %v173
    %v213 = vunpack.c.l.b16 %v174
    %v214 = vunpack.c.l.b16 %v175
    %v215 = vunpack.c.l.b16 %v176
    %v216 = vunpack.c.l.b16 %v177
    %v217 = vunpack.c.l.b16 %v178
    %v218 = vunpack.c.l.b16 %v179
    %v219 = vunpack.c.l.b16 %v180
    %v220 = vunpack.c.l.b16 %v181
    %v221 = vunpack.c.l.b16 %v182
    %v222 = vunpack.c.l.b16 %v183
    %v223 = vunpack.c.l.b16 %v184
    %v224 = vunpack.c.l.b16 %v185
    %v225 = vunpack.c.l.b16 %v186
    %v226 = vunpack.c.l.b16 %v187
    %v227 = vunpack.c.l.b16 %v188
    %v228 = vpack.c.b16 %v213, %v212
    %v229 = vpack.c.b16 %v215, %v214
    %v230 = vpack.c.b16 %v217, %v216
    %v231 = vpack.c.b16 %v219, %v218
    %v232 = vpack.c.b16 %v221, %v220
    %v233 = vpack.c.b16 %v223, %v222
    %v234 = vpack.c.b16 %v225, %v224
    %v235 = vpack.c.b16 %v227, %v226
    %244 = vmatprep.subr.bf16.mxu0 0
    %245 = vmatpush1.bf16.msra.mxu0 %v228
    %246 = vmatprep.subr.bf16.mxu0 0
    %247 = vmatpush1.bf16.msra.mxu0 %v229
    %248 = vmatprep.subr.bf16.mxu0 0
    %249 = vmatpush1.bf16.msra.mxu0 %v230
    %250 = vmatprep.subr.bf16.mxu0 0
    %251 = vmatpush1.bf16.msra.mxu0 %v231
    %252 = vmatprep.subr.bf16.mxu0 0
    %253 = vmatpush1.bf16.msra.mxu0 %v232
    %254 = vmatprep.subr.bf16.mxu0 0
    %255 = vmatpush1.bf16.msra.mxu0 %v233
    %256 = vmatprep.subr.bf16.mxu0 0
    %257 = vmatpush1.bf16.msra.mxu0 %v234
    %258 = vmatprep.subr.bf16.mxu0 0
    %259 = vmatpush1.bf16.msra.mxu0 %v235
    %260 = vmatprep.subr.bf16.mxu0 0
    %261 = vmatpush1.bf16.msra.mxu0 0
    %262 = vmatprep.subr.bf16.mxu0 0
    %263 = vmatpush1.bf16.msra.mxu0 0
    %264 = vmatprep.subr.bf16.mxu0 0
    %265 = vmatpush1.bf16.msra.mxu0 0
    %266 = vmatprep.subr.bf16.mxu0 0
    %267 = vmatpush1.bf16.msra.mxu0 0
    %268 = vmatprep.subr.bf16.mxu0 0
    %269 = vmatpush1.bf16.msra.mxu0 0
    %270 = vmatprep.subr.bf16.mxu0 0
    %271 = vmatpush1.bf16.msra.mxu0 0
    %272 = vmatprep.subr.bf16.mxu0 0
    %273 = vmatpush1.bf16.msra.mxu0 0
    %274 = vmatprep.subr.bf16.mxu0 0
    %275 = vmatpush1.bf16.msra.mxu0 0
    %276 = vmatprep.mubr.bf16.mxu0 0
    %277 = vmatmul.mubr.bf16.gmra.mrb[0].mxu0 %v172
    %v278 = vpop.f32.mrb[0].mxu0
    %v279 = vadd.f32 %v194, %v278
    %v280 = vpop.f32.mrb[0].mxu0
    %v281 = vpop.f32.mrb[0].mxu0
    %v282 = vpop.f32.mrb[0].mxu0
    %283 = vdwg.mxu0
    %v284 = vmax.f32 %v279, 0.0
    %v285 = vpack.c.bf16 %v284, %v284
    %v286 = vld [vmem:[%s5] sm:$0xf]
    %v287 = vld [vmem:[%s5 + $0x4] sm:$0xf]
    %v288 = vld [vmem:[%s5 + $0x8] sm:$0xf]
    %v289 = vld [vmem:[%s5 + $0xc] sm:$0xf]
    %v290 = vld [vmem:[%s5 + $0x10] sm:$0xf]
    %v291 = vld [vmem:[%s5 + $0x14] sm:$0xf]
    %v292 = vld [vmem:[%s5 + $0x18] sm:$0xf]
    %v293 = vld [vmem:[%s5 + $0x1c] sm:$0xf]
    %v294 = vld [vmem:[#allocation10] sm:$0x1]
    %v296 = vlaneseq
    %v297 = vshrl.u32 %v296, 7
    %v298 = vsub.s32 0, %v297
    %v299 = vrot.slane %v294, %v298
    %v309 = vunpack.c.l.b16 %v286
    %v310 = vunpack.c.l.b16 %v287
    %v311 = vunpack.c.l.b16 %v288
    %v312 = vunpack.c.l.b16 %v289
    %v313 = vunpack.c.l.b16 %v290
    %v314 = vunpack.c.l.b16 %v291
    %v315 = vunpack.c.l.b16 %v292
    %v316 = vunpack.c.l.b16 %v293
    %v317 = vpack.c.b16 %v310, %v309
    %v318 = vpack.c.b16 %v312, %v311
    %v319 = vpack.c.b16 %v314, %v313
    %v320 = vpack.c.b16 %v316, %v315
    %vm325 = vcmask 523264
    %v327 = vsel %vm325, %v285, 0
    %329 = vmatprep.subr.bf16.mxu0 0
    %330 = vmatpush1.bf16.msra.mxu0 %v317
    %331 = vmatprep.subr.bf16.mxu0 0
    %332 = vmatpush1.bf16.msra.mxu0 %v318
    %333 = vmatprep.subr.bf16.mxu0 0
    %334 = vmatpush1.bf16.msra.mxu0 %v319
    %335 = vmatprep.subr.bf16.mxu0 0
    %336 = vmatpush1.bf16.msra.mxu0 %v320
    %337 = vmatprep.subr.bf16.mxu0 0
    %338 = vmatpush1.bf16.msra.mxu0 0
    %339 = vmatprep.subr.bf16.mxu0 0
    %340 = vmatpush1.bf16.msra.mxu0 0
    %341 = vmatprep.subr.bf16.mxu0 0
    %342 = vmatpush1.bf16.msra.mxu0 0
    %343 = vmatprep.subr.bf16.mxu0 0
    %344 = vmatpush1.bf16.msra.mxu0 0
    %345 = vmatprep.subr.bf16.mxu0 0
    %346 = vmatpush1.bf16.msra.mxu0 0
    %347 = vmatprep.subr.bf16.mxu0 0
    %348 = vmatpush1.bf16.msra.mxu0 0
    %349 = vmatprep.subr.bf16.mxu0 0
    %350 = vmatpush1.bf16.msra.mxu0 0
    %351 = vmatprep.subr.bf16.mxu0 0
    %352 = vmatpush1.bf16.msra.mxu0 0
    %353 = vmatprep.subr.bf16.mxu0 0
    %354 = vmatpush1.bf16.msra.mxu0 0
    %355 = vmatprep.subr.bf16.mxu0 0
    %356 = vmatpush1.bf16.msra.mxu0 0
    %357 = vmatprep.subr.bf16.mxu0 0
    %358 = vmatpush1.bf16.msra.mxu0 0
    %359 = vmatprep.subr.bf16.mxu0 0
    %360 = vmatpush1.bf16.msra.mxu0 0
    %361 = vmatprep.mubr.bf16.mxu0 0
    %362 = vmatmul.mubr.bf16.gmra.mrb[0].mxu0 %v327
    %v363 = vpop.f32.mrb[0].mxu0
    %v364 = vadd.f32 %v299, %v363
    %v365 = vpop.f32.mrb[0].mxu0
    %v366 = vpop.f32.mrb[0].mxu0
    %v367 = vpop.f32.mrb[0].mxu0
    %368 = vdwg.mxu0
    %v369 = vmax.f32 %v364, 0.0
    %v370 = vpack.c.bf16 %v369, %v369
    %v371 = vld [vmem:[#allocation11] sm:$0xf]
    %v372 = vld [vmem:[#allocation11 + $0x4] sm:$0xf]
    %v373 = vld [vmem:[#allocation11 + $0x8] sm:$0xf]
    %v374 = vld [vmem:[#allocation11 + $0xc] sm:$0xf]
    %v375 = vld [vmem:[%s8] sm:$0x1]
    %v377 = vlaneseq
    %v378 = vshrl.u32 %v377, 7
    %v379 = vsub.s32 0, %v378
    %v380 = vrot.slane %v375, %v379
    %v386 = vunpack.c.l.b16 %v371
    %v387 = vunpack.c.l.b16 %v372
    %v388 = vunpack.c.l.b16 %v373
    %v389 = vunpack.c.l.b16 %v374
    %v390 = vpack.c.b16 %v387, %v386
    %v391 = vpack.c.b16 %v389, %v388
    %vm394 = vcmask 261120
    %v396 = vsel %vm394, %v370, 0
    %398 = vmatprep.subr.bf16.mxu0 0
    %399 = vmatpush1.bf16.msra.mxu0 %v390
    %400 = vmatprep.subr.bf16.mxu0 0
    %401 = vmatpush1.bf16.msra.mxu0 %v391
    %402 = vmatprep.subr.bf16.mxu0 0
    %403 = vmatpush1.bf16.msra.mxu0 0
    %404 = vmatprep.subr.bf16.mxu0 0
    %405 = vmatpush1.bf16.msra.mxu0 0
    %406 = vmatprep.subr.bf16.mxu0 0
    %407 = vmatpush1.bf16.msra.mxu0 0
    %408 = vmatprep.subr.bf16.mxu0 0
    %409 = vmatpush1.bf16.msra.mxu0 0
    %410 = vmatprep.subr.bf16.mxu0 0
    %411 = vmatpush1.bf16.msra.mxu0 0
    %412 = vmatprep.subr.bf16.mxu0 0
    %413 = vmatpush1.bf16.msra.mxu0 0
    %414 = vmatprep.subr.bf16.mxu0 0
    %415 = vmatpush1.bf16.msra.mxu0 0
    %416 = vmatprep.subr.bf16.mxu0 0
    %417 = vmatpush1.bf16.msra.mxu0 0
    %418 = vmatprep.subr.bf16.mxu0 0
    %419 = vmatpush1.bf16.msra.mxu0 0
    %420 = vmatprep.subr.bf16.mxu0 0
    %421 = vmatpush1.bf16.msra.mxu0 0
    %422 = vmatprep.subr.bf16.mxu0 0
    %423 = vmatpush1.bf16.msra.mxu0 0
    %424 = vmatprep.subr.bf16.mxu0 0
    %425 = vmatpush1.bf16.msra.mxu0 0
    %426 = vmatprep.subr.bf16.mxu0 0
    %427 = vmatpush1.bf16.msra.mxu0 0
    %428 = vmatprep.subr.bf16.mxu0 0
    %429 = vmatpush1.bf16.msra.mxu0 0
    %430 = vmatprep.mubr.bf16.mxu0 0
    %431 = vmatmul.mubr.bf16.gmra.mrb[0].mxu0 %v396
    %v432 = vpop.f32.mrb[0].mxu0
    %v433 = vadd.f32 %v380, %v432
    %v434 = vpop.f32.mrb[0].mxu0
    %v435 = vpop.f32.mrb[0].mxu0
    %v436 = vpop.f32.mrb[0].mxu0
    %437 = vdwg.mxu0
    %v438 = vxor.u32 %v433, 2147483648
    %v439 = vmul.f32 %v438, 1.442695
    %v440 = vpow.pop %v439
    %v441 = vadd.f32 %v440, 1.0
    %v442 = vrcp.pop %v441
    %v443 = vmul.f32 1.0, %v442
    %vm444 = vcmask 64512
    %445 = vst.msk [vmem:[#allocation13] sm:$0xff] %vm444, %v443
    // Predicated region
    $region62: #{neuralnetwork2_forward.1} parent=1 // pred_check
      _
    $region63: #{neuralnetwork2_forward.1} parent=1 // pred_check_branch
      %447 = sbr.rel (0) target = $region65
    $region64: #{neuralnetwork2_forward.1} parent=1 // pred_region
      %s449 = ssub.s32 128, 128
      %450 = vsyncadd [#allocation4], %s449
      %s452 = sshll.u32 [#allocation13], 4
      %s453 = int_to_ptr.vmem [resolvable:$true] %s452
      %455 = dma.vmem_to_hbm [thread:$0]  %s453, 128, %s9, [#allocation4]
    $region65: #{neuralnetwork2_forward.1} parent=1 // pred_fallthru
      _
    // Predicated region
    $region66: #{neuralnetwork2_forward.1} parent=1 // pred_check
      _
    $region67: #{neuralnetwork2_forward.1} parent=1 // pred_check_branch
      %457 = sbr.rel (0) target = $region69
    $region68: #{neuralnetwork2_forward.1} parent=1 // pred_region
      %458 = dma.done [#allocation4], 128
    $region69: #{neuralnetwork2_forward.1} parent=1 // pred_fallthru
      _
    %459 = vsyncpa [#allocation3], 1
    %460 = vsyncpa [#allocation6], 1
    %461 = vsyncpa [#allocation9], 1
    %462 = vsyncpa [#allocation12], 1
    %463 = vsyncpa [#allocation4], 1

</llo_original>
